<compile_context>
chip_gen: v5e
topology: v5e:2x2
jax: 0.10.0
libtpu: 0.0.40
codegen_flags: <defaults>
</compile_context>

<pallas_src>
import jax
import jax.numpy as jnp
from jax.experimental import pallas as pl
from jax.experimental.pallas import tpu as pltpu

EPS = 1e-5


# ---------------------------------------------------------------------------
# Kernel: operates on one (TB, Dp) batch tile; weights stay resident in VMEM.
# ---------------------------------------------------------------------------
def residual_block_kernel(
    x_ref,                      # (TB, Dp) f32
    w1_ref, b1_ref,             # (Dp, Hp) bf16, (1, Hp) f32   (BN1 folded in)
    w2_ref, b2_ref,             # (Hp, Dp) bf16, (1, Dp) f32   (BN2 folded in)
    wa1_ref, ba1_ref,           # (Dp, HALFp) bf16, (1, HALFp) f32
    wa2_ref, ba2_ref,           # (HALFp, Dp) bf16, (1, Dp) f32
    out_ref,                    # (TB, Dp) f32
):
    x = x_ref[...]                                           # f32

    # ---- Linear -> (folded BN) -> ReLU -> (Dropout = identity) ----
    h = jnp.dot(x.astype(jnp.bfloat16), w1_ref[...],
                preferred_element_type=jnp.float32) + b1_ref[...]
    h = jnp.maximum(h, 0.0)

    # ---- Linear -> (folded BN) ----
    o = jnp.dot(h.astype(jnp.bfloat16), w2_ref[...],
                preferred_element_type=jnp.float32) + b2_ref[...]

    # ---- Attention: Linear -> ReLU -> Linear -> Sigmoid, then gate ----
    a = jnp.dot(o.astype(jnp.bfloat16), wa1_ref[...],
                preferred_element_type=jnp.float32) + ba1_ref[...]
    a = jnp.maximum(a, 0.0)
    a = jnp.dot(a.astype(jnp.bfloat16), wa2_ref[...],
                preferred_element_type=jnp.float32) + ba2_ref[...]
    a = jax.nn.sigmoid(a)

    # ---- gate + residual + final ReLU ----
    out_ref[...] = jnp.maximum(o * a + x, 0.0)


# ---------------------------------------------------------------------------
# Wrapper helpers
# ---------------------------------------------------------------------------
def _round_up(n, m):
    return ((n + m - 1) // m) * m


def _pad_to(a, shape):
    return jnp.pad(a, [(0, t - s) for s, t in zip(a.shape, shape)])


def _fold_bn(w, b, g, be, m, v):
    """Fold inference-mode BatchNorm1d into the preceding Linear (x@w + b)."""
    s = g * jax.lax.rsqrt(v + EPS)          # (1, out)
    return w * s, (b - m) * s + be


def _choose_tb(Dp, Hp, HALFp, max_tb=1024, budget=32 * 1024 * 1024):
    """Largest power-of-two batch tile whose VMEM estimate fits the budget
    (budget chosen to be safe on v7x's smaller VMEM)."""
    weight_bytes = 2 * (Dp * Hp + Hp * Dp + Dp * HALFp + HALFp * Dp) \
        + 4 * (Hp + 2 * Dp + HALFp)
    tb = max_tb
    while tb > 8:
        # double-buffered x/out tiles + f32 intermediates (h, o, attn, gate)
        act = tb * 4 * (2 * Dp + 2 * Dp + Hp + 2 * Dp + HALFp)
        if weight_bytes + act <= budget:
            break
        tb //= 2
    return tb, weight_bytes


# ---------------------------------------------------------------------------
# Public entry point
# ---------------------------------------------------------------------------
def residual_block(x, params, *, max_tb=1024):
    """x: (B, D) float32. params: dict from init_params (unfolded PyTorch-style)."""
    B, D = x.shape
    H = params["w1"].shape[1]
    HALF = params["wa1"].shape[1]

    # Lane-dense padded feature dims (multiples of 128).
    Dp = _round_up(D, 128)
    Hp = _round_up(H, 128)
    HALFp = _round_up(HALF, 128)

    # Fold BN into the linears (f32), then zero-pad; weights to bf16 for the MXU.
    w1, b1 = _fold_bn(params["w1"], params["b1"], params["g1"], params["be1"],
                      params["m1"], params["v1"])
    w2, b2 = _fold_bn(params["w2"], params["b2"], params["g2"], params["be2"],
                      params["m2"], params["v2"])
    w1p = _pad_to(w1, (Dp, Hp)).astype(jnp.bfloat16)
    b1p = _pad_to(b1, (1, Hp))
    w2p = _pad_to(w2, (Hp, Dp)).astype(jnp.bfloat16)
    b2p = _pad_to(b2, (1, Dp))
    wa1p = _pad_to(params["wa1"], (Dp, HALFp)).astype(jnp.bfloat16)
    ba1p = _pad_to(params["ba1"], (1, HALFp))
    wa2p = _pad_to(params["wa2"], (HALFp, Dp)).astype(jnp.bfloat16)
    ba2p = _pad_to(params["ba2"], (1, Dp))

    # Batch tiling.
    tb, weight_bytes = _choose_tb(Dp, Hp, HALFp, max_tb)
    TB = min(tb, _round_up(B, 8))
    Bp = _round_up(B, TB)
    grid = (Bp // TB,)

    x_p = _pad_to(x.astype(jnp.float32), (Bp, Dp))

    # VMEM budget hint (double-buffered x/out tiles + resident weights + temps).
    act_bytes = TB * 4 * (2 * Dp + 2 * Dp + Hp + 2 * Dp + HALFp)
    vmem_limit = int(min(max(2 * (weight_bytes + act_bytes), 16 * 1024 * 1024),
                         48 * 1024 * 1024))

    matmul_flops = 2 * Bp * (Dp * Hp + Hp * Dp + Dp * HALFp + HALFp * Dp)
    bytes_accessed = (2 * Bp * Dp * 4                                  # x in + out
                      + 2 * (Dp * Hp + Hp * Dp + Dp * HALFp + HALFp * Dp)  # bf16 weights
                      + 4 * (Hp + 2 * Dp + HALFp))                     # f32 biases

    resident = lambda i: (0, 0)   # weights/biases: same block every grid step
    out_p = pl.pallas_call(
        residual_block_kernel,
        out_shape=jax.ShapeDtypeStruct((Bp, Dp), jnp.float32),
        grid_spec=pltpu.PrefetchScalarGridSpec(
            num_scalar_prefetch=0,
            grid=grid,
            in_specs=[
                pl.BlockSpec((TB, Dp), lambda i: (i, 0)),     # x tile
                pl.BlockSpec((Dp, Hp), resident),
                pl.BlockSpec((1, Hp), resident),
                pl.BlockSpec((Hp, Dp), resident),
                pl.BlockSpec((1, Dp), resident),
                pl.BlockSpec((Dp, HALFp), resident),
                pl.BlockSpec((1, HALFp), resident),
                pl.BlockSpec((HALFp, Dp), resident),
                pl.BlockSpec((1, Dp), resident),
            ],
            out_specs=pl.BlockSpec((TB, Dp), lambda i: (i, 0)),
        ),
        compiler_params=pltpu.CompilerParams(
            dimension_semantics=("parallel",),
            vmem_limit_bytes=vmem_limit,
        ),
        cost_estimate=pl.CostEstimate(
            flops=matmul_flops,
            transcendentals=Bp * Dp,          # sigmoid
            bytes_accessed=bytes_accessed,
        ),
        input_output_aliases={0: 0},          # out reuses x_p's HBM buffer
    )(x_p, w1p, b1p, w2p, b2p, wa1p, ba1p, wa2p, ba2p)

    return out_p[:B, :D]


# ---------------------------------------------------------------------------
# Deterministic parameter init matching the PyTorch module's shapes.
# Linear weights stored transposed ((in, out)) so the kernel does x @ W.
# ---------------------------------------------------------------------------
def init_params(key, input_dim, hidden_dim):
    ks = jax.random.split(key, 8)
    half = input_dim // 2

    def lin(k, fan_in, fan_out):
        bound = 1.0 / jnp.sqrt(fan_in)
        kw, kb = jax.random.split(k)
        w = jax.random.uniform(kw, (fan_in, fan_out), jnp.float32, -bound, bound)
        b = jax.random.uniform(kb, (1, fan_out), jnp.float32, -bound, bound)
        return w, b

    w1, b1 = lin(ks[0], input_dim, hidden_dim)
    w2, b2 = lin(ks[1], hidden_dim, input_dim)
    wa1, ba1 = lin(ks[2], input_dim, half)
    wa2, ba2 = lin(ks[3], half, input_dim)

    def bn(k, dim):
        km, kv = jax.random.split(k)
        g = jnp.ones((1, dim), jnp.float32)
        be = jnp.zeros((1, dim), jnp.float32)
        m = 0.1 * jax.random.normal(km, (1, dim), jnp.float32)
        v = 1.0 + 0.1 * jax.random.uniform(kv, (1, dim), jnp.float32)
        return g, be, m, v

    g1, be1, m1, v1 = bn(ks[4], hidden_dim)
    g2, be2, m2, v2 = bn(ks[5], input_dim)

    return dict(
        w1=w1, b1=b1, g1=g1, be1=be1, m1=m1, v1=v1,
        w2=w2, b2=b2, g2=g2, be2=be2, m2=m2, v2=v2,
        wa1=wa1, ba1=ba1, wa2=wa2, ba2=ba2,
    )


def reference(x, p):
    """Pure-JAX f32 reference of the same forward (inference-mode BN/dropout)."""
    h = x @ p["w1"] + p["b1"]
    h = (h - p["m1"]) * jax.lax.rsqrt(p["v1"] + EPS) * p["g1"] + p["be1"]
    h = jnp.maximum(h, 0.0)
    o = h @ p["w2"] + p["b2"]
    o = (o - p["m2"]) * jax.lax.rsqrt(p["v2"] + EPS) * p["g2"] + p["be2"]
    a = jnp.maximum(o @ p["wa1"] + p["ba1"], 0.0)
    a = jax.nn.sigmoid(a @ p["wa2"] + p["ba2"])
    o = o * a
    return jnp.maximum(o + x, 0.0)


if __name__ == "__main__":
    key = jax.random.PRNGKey(0)
    kx, kp = jax.random.split(key)

    batch, input_dim, hidden_dim = 8, 32, 64
    x = jax.random.normal(kx, (batch, input_dim), jnp.float32)
    params = init_params(kp, input_dim, hidden_dim)

    out = residual_block(x, params)
    out = jax.block_until_ready(out)

    ref = reference(x, params)
    assert out.shape == (batch, input_dim)
    # bf16 MXU inputs with f32 accumulation -> tolerance loosened accordingly.
    assert jnp.allclose(out, ref, atol=2e-2, rtol=2e-2), \
        float(jnp.max(jnp.abs(out - ref)))
    print("KERNEL_OK")
</pallas_src>

<mosaic_0001>
module attributes {stable_mosaic.version = 11 : i64} {
  func.func @residual_block_kernel(%arg0: i32, %arg1: memref<8x128xf32, #tpu.memory_space<vmem>>, %arg2: memref<128x128xbf16, #tpu.memory_space<vmem>>, %arg3: memref<1x128xf32, #tpu.memory_space<vmem>>, %arg4: memref<128x128xbf16, #tpu.memory_space<vmem>>, %arg5: memref<1x128xf32, #tpu.memory_space<vmem>>, %arg6: memref<128x128xbf16, #tpu.memory_space<vmem>>, %arg7: memref<1x128xf32, #tpu.memory_space<vmem>>, %arg8: memref<128x128xbf16, #tpu.memory_space<vmem>>, %arg9: memref<1x128xf32, #tpu.memory_space<vmem>>, %arg10: memref<8x128xf32, #tpu.memory_space<vmem>>) attributes {dimension_semantics = [#tpu.dimension_semantics<parallel>], iteration_bounds = array<i64: 1>, scalar_prefetch = 0 : i64, scratch_operands = 0 : i64, tpu.core_type = #tpu.core_type<tc>, window_params = [{transform_indices = @transform_0, window_bounds = array<i64: 8, 128>}, {pipeline_mode = #tpu.pipeline_mode<synchronous>, transform_indices = @transform_1, window_bounds = array<i64: 128, 128>}, {pipeline_mode = #tpu.pipeline_mode<synchronous>, transform_indices = @transform_2, window_bounds = array<i64: 1, 128>}, {pipeline_mode = #tpu.pipeline_mode<synchronous>, transform_indices = @transform_3, window_bounds = array<i64: 128, 128>}, {pipeline_mode = #tpu.pipeline_mode<synchronous>, transform_indices = @transform_4, window_bounds = array<i64: 1, 128>}, {pipeline_mode = #tpu.pipeline_mode<synchronous>, transform_indices = @transform_5, window_bounds = array<i64: 128, 128>}, {pipeline_mode = #tpu.pipeline_mode<synchronous>, transform_indices = @transform_6, window_bounds = array<i64: 1, 128>}, {pipeline_mode = #tpu.pipeline_mode<synchronous>, transform_indices = @transform_7, window_bounds = array<i64: 128, 128>}, {pipeline_mode = #tpu.pipeline_mode<synchronous>, transform_indices = @transform_8, window_bounds = array<i64: 1, 128>}, {transform_indices = @transform_9, window_bounds = array<i64: 8, 128>}]} {
    %c0 = arith.constant 0 : index
    %c0_0 = arith.constant 0 : index
    %0 = vector.load %arg1[%c0, %c0_0] : memref<8x128xf32, #tpu.memory_space<vmem>>, vector<8x128xf32>
    %1 = arith.truncf %0 : vector<8x128xf32> to vector<8x128xbf16>
    %c0_1 = arith.constant 0 : index
    %c0_2 = arith.constant 0 : index
    %2 = vector.load %arg2[%c0_1, %c0_2] : memref<128x128xbf16, #tpu.memory_space<vmem>>, vector<128x128xbf16>
    %cst = arith.constant dense<0.000000e+00> : vector<8x128xf32>
    %3 = tpu.matmul %1, %2, %cst {dimension_numbers = #tpu.dot_dimension_numbers<[1], [0], [0], [1], [0, 0, 1, 1], [], []>} : vector<8x128xbf16>, vector<128x128xbf16>, vector<8x128xf32> -> vector<8x128xf32>
    %c0_3 = arith.constant 0 : index
    %c0_4 = arith.constant 0 : index
    %4 = vector.load %arg3[%c0_3, %c0_4] : memref<1x128xf32, #tpu.memory_space<vmem>>, vector<1x128xf32>
    %5 = vector.broadcast %4 : vector<1x128xf32> to vector<8x128xf32>
    %6 = arith.addf %3, %5 : vector<8x128xf32>
    %cst_5 = arith.constant 0.000000e+00 : f32
    %7 = vector.broadcast %cst_5 : f32 to vector<8x128xf32>
    %8 = arith.maximumf %6, %7 : vector<8x128xf32>
    %9 = arith.truncf %8 : vector<8x128xf32> to vector<8x128xbf16>
    %c0_6 = arith.constant 0 : index
    %c0_7 = arith.constant 0 : index
    %10 = vector.load %arg4[%c0_6, %c0_7] : memref<128x128xbf16, #tpu.memory_space<vmem>>, vector<128x128xbf16>
    %cst_8 = arith.constant dense<0.000000e+00> : vector<8x128xf32>
    %11 = tpu.matmul %9, %10, %cst_8 {dimension_numbers = #tpu.dot_dimension_numbers<[1], [0], [0], [1], [0, 0, 1, 1], [], []>} : vector<8x128xbf16>, vector<128x128xbf16>, vector<8x128xf32> -> vector<8x128xf32>
    %c0_9 = arith.constant 0 : index
    %c0_10 = arith.constant 0 : index
    %12 = vector.load %arg5[%c0_9, %c0_10] : memref<1x128xf32, #tpu.memory_space<vmem>>, vector<1x128xf32>
    %13 = vector.broadcast %12 : vector<1x128xf32> to vector<8x128xf32>
    %14 = arith.addf %11, %13 : vector<8x128xf32>
    %15 = arith.truncf %14 : vector<8x128xf32> to vector<8x128xbf16>
    %c0_11 = arith.constant 0 : index
    %c0_12 = arith.constant 0 : index
    %16 = vector.load %arg6[%c0_11, %c0_12] : memref<128x128xbf16, #tpu.memory_space<vmem>>, vector<128x128xbf16>
    %cst_13 = arith.constant dense<0.000000e+00> : vector<8x128xf32>
    %17 = tpu.matmul %15, %16, %cst_13 {dimension_numbers = #tpu.dot_dimension_numbers<[1], [0], [0], [1], [0, 0, 1, 1], [], []>} : vector<8x128xbf16>, vector<128x128xbf16>, vector<8x128xf32> -> vector<8x128xf32>
    %c0_14 = arith.constant 0 : index
    %c0_15 = arith.constant 0 : index
    %18 = vector.load %arg7[%c0_14, %c0_15] : memref<1x128xf32, #tpu.memory_space<vmem>>, vector<1x128xf32>
    %19 = vector.broadcast %18 : vector<1x128xf32> to vector<8x128xf32>
    %20 = arith.addf %17, %19 : vector<8x128xf32>
    %cst_16 = arith.constant 0.000000e+00 : f32
    %21 = vector.broadcast %cst_16 : f32 to vector<8x128xf32>
    %22 = arith.maximumf %20, %21 : vector<8x128xf32>
    %23 = arith.truncf %22 : vector<8x128xf32> to vector<8x128xbf16>
    %c0_17 = arith.constant 0 : index
    %c0_18 = arith.constant 0 : index
    %24 = vector.load %arg8[%c0_17, %c0_18] : memref<128x128xbf16, #tpu.memory_space<vmem>>, vector<128x128xbf16>
    %cst_19 = arith.constant dense<0.000000e+00> : vector<8x128xf32>
    %25 = tpu.matmul %23, %24, %cst_19 {dimension_numbers = #tpu.dot_dimension_numbers<[1], [0], [0], [1], [0, 0, 1, 1], [], []>} : vector<8x128xbf16>, vector<128x128xbf16>, vector<8x128xf32> -> vector<8x128xf32>
    %c0_20 = arith.constant 0 : index
    %c0_21 = arith.constant 0 : index
    %26 = vector.load %arg9[%c0_20, %c0_21] : memref<1x128xf32, #tpu.memory_space<vmem>>, vector<1x128xf32>
    %27 = vector.broadcast %26 : vector<1x128xf32> to vector<8x128xf32>
    %28 = arith.addf %25, %27 : vector<8x128xf32>
    %29 = arith.negf %28 : vector<8x128xf32>
    %30 = math.exp %29 : vector<8x128xf32>
    %cst_22 = arith.constant 1.000000e+00 : f32
    %31 = vector.broadcast %cst_22 : f32 to vector<8x128xf32>
    %32 = arith.addf %31, %30 : vector<8x128xf32>
    %33 = arith.divf %31, %32 : vector<8x128xf32>
    %34 = arith.mulf %14, %33 : vector<8x128xf32>
    %35 = arith.addf %34, %0 : vector<8x128xf32>
    %cst_23 = arith.constant 0.000000e+00 : f32
    %36 = vector.broadcast %cst_23 : f32 to vector<8x128xf32>
    %37 = arith.maximumf %35, %36 : vector<8x128xf32>
    %c0_24 = arith.constant 0 : index
    %c0_25 = arith.constant 0 : index
    %38 = vector.load %arg10[%c0_24, %c0_25] : memref<8x128xf32, #tpu.memory_space<vmem>>, vector<8x128xf32>
    tpu.vector_store %arg10[%c0_24, %c0_25], %37 {strides = array<i32>} : memref<8x128xf32, #tpu.memory_space<vmem>>, vector<8x128xf32>,
    return
  }
  func.func @transform_0(%arg0: i32) -> (i32, i32) {
    %c0_i32 = arith.constant 0 : i32
    %c0_i32_0 = arith.constant 0 : i32
    return %arg0, %c0_i32 : i32, i32
  }
  func.func @transform_1(%arg0: i32) -> (i32, i32) {
    %c0_i32 = arith.constant 0 : i32
    %c0_i32_0 = arith.constant 0 : i32
    %c0_i32_1 = arith.constant 0 : i32
    return %c0_i32, %c0_i32_0 : i32, i32
  }
  func.func @transform_2(%arg0: i32) -> (i32, i32) {
    %c0_i32 = arith.constant 0 : i32
    %c0_i32_0 = arith.constant 0 : i32
    %c0_i32_1 = arith.constant 0 : i32
    return %c0_i32, %c0_i32_0 : i32, i32
  }
  func.func @transform_3(%arg0: i32) -> (i32, i32) {
    %c0_i32 = arith.constant 0 : i32
    %c0_i32_0 = arith.constant 0 : i32
    %c0_i32_1 = arith.constant 0 : i32
    return %c0_i32, %c0_i32_0 : i32, i32
  }
  func.func @transform_4(%arg0: i32) -> (i32, i32) {
    %c0_i32 = arith.constant 0 : i32
    %c0_i32_0 = arith.constant 0 : i32
    %c0_i32_1 = arith.constant 0 : i32
    return %c0_i32, %c0_i32_0 : i32, i32
  }
  func.func @transform_5(%arg0: i32) -> (i32, i32) {
    %c0_i32 = arith.constant 0 : i32
    %c0_i32_0 = arith.constant 0 : i32
    %c0_i32_1 = arith.constant 0 : i32
    return %c0_i32, %c0_i32_0 : i32, i32
  }
  func.func @transform_6(%arg0: i32) -> (i32, i32) {
    %c0_i32 = arith.constant 0 : i32
    %c0_i32_0 = arith.constant 0 : i32
    %c0_i32_1 = arith.constant 0 : i32
    return %c0_i32, %c0_i32_0 : i32, i32
  }
  func.func @transform_7(%arg0: i32) -> (i32, i32) {
    %c0_i32 = arith.constant 0 : i32
    %c0_i32_0 = arith.constant 0 : i32
    %c0_i32_1 = arith.constant 0 : i32
    return %c0_i32, %c0_i32_0 : i32, i32
  }
  func.func @transform_8(%arg0: i32) -> (i32, i32) {
    %c0_i32 = arith.constant 0 : i32
    %c0_i32_0 = arith.constant 0 : i32
    %c0_i32_1 = arith.constant 0 : i32
    return %c0_i32, %c0_i32_0 : i32, i32
  }
  func.func @transform_9(%arg0: i32) -> (i32, i32) {
    %c0_i32 = arith.constant 0 : i32
    %c0_i32_0 = arith.constant 0 : i32
    return %arg0, %c0_i32 : i32, i32
  }
}

</mosaic_0001>

<llo_original>
// kernel: tpu_custom_call.1
$region0: #{tpu_custom_call.1}
  #allocation0 [shape = 'u32[]', space=smem, size = 0x4, offset = 0x4, fixed_abs, tag = 'smem constant byte address 0x4 - core index']
  #allocation1 [shape = 'u32[72,128]{1,0:T(1,128)}', space=vmem, size = 0x9000, scoped, tag = 'internal scratch']
  %s0 = inlined_call_operand.hbm [shape: f32[8,128], index: 0, kind: input, shape index: {}, may-alias: {0,9}]
  %s1 = inlined_call_operand.hbm [shape: bf16[128,128], index: 1, kind: input, shape index: {}]
  %s2 = inlined_call_operand.vmem [shape: f32[1,128], index: 2, kind: input, shape index: {}]
  %s3 = inlined_call_operand.hbm [shape: bf16[128,128], index: 3, kind: input, shape index: {}]
  %s4 = inlined_call_operand.vmem [shape: f32[1,128], index: 4, kind: input, shape index: {}]
  %s5 = inlined_call_operand.hbm [shape: bf16[128,128], index: 5, kind: input, shape index: {}]
  %s6 = inlined_call_operand.vmem [shape: f32[1,128], index: 6, kind: input, shape index: {}]
  %s7 = inlined_call_operand.hbm [shape: bf16[128,128], index: 7, kind: input, shape index: {}]
  %s8 = inlined_call_operand.vmem [shape: f32[1,128], index: 8, kind: input, shape index: {}]
  %s9 = inlined_call_operand.hbm [shape: f32[8,128], index: 9, kind: output, shape index: {}, may-alias: {0,9}]
  %s10 = sld [smem:[#allocation0]]
  $region66: #{tpu_custom_call.1} parent=0
    _
  %s12 = ssub.s32 1, %s10
  %s13 = scalar_select 0, %s12, %s10
  $region1: #{tpu_custom_call.1} parent=0
    #allocation2 [shape = 'u8[4096]{0}', space=vmem, size = 0x1000, scoped, tag = 'input window, operand 0, single buffered']
    #allocation3 [shape = 's32[1]{0}', space=sflag, size = 0x4, scoped, tag = 'scoped memory for tpu_custom_call.1']
    #allocation4 [shape = 's32[1]{0}', space=sflag, size = 0x4, scoped, tag = 'scoped memory for tpu_custom_call.1']
    #allocation5 [shape = 'u8[32768]{0}', space=vmem, size = 0x8000, scoped, tag = 'input window, operand 1, single buffered']
    #allocation6 [shape = 's32[1]{0}', space=sflag, size = 0x4, scoped, tag = 'scoped memory for tpu_custom_call.1']
    #allocation7 [shape = 'u8[32768]{0}', space=vmem, size = 0x8000, scoped, tag = 'input window, operand 3, single buffered']
    #allocation8 [shape = 'u8[32768]{0}', space=vmem, size = 0x8000, scoped, tag = 'input window, operand 5, single buffered']
    #allocation9 [shape = 's32[1]{0}', space=sflag, size = 0x4, scoped, tag = 'scoped memory for tpu_custom_call.1']
    #allocation10 [shape = 'u8[32768]{0}', space=vmem, size = 0x8000, scoped, tag = 'input window, operand 7, single buffered']
    #allocation11 [shape = 'u8[4096]{0}', space=vmem, size = 0x1000, scoped, tag = 'output window, operand 0, single buffered']
    %14 = vsyncpa [#allocation3], 0
    %15 = vsyncpa [#allocation6], 0
    %16 = vsyncpa [#allocation9], 0
    %17 = vsyncpa [#allocation4], 0
    // Predicated region
    $region2: #{tpu_custom_call.1} parent=1 // pred_check
      _
    $region3: #{tpu_custom_call.1} parent=1 // pred_check_branch
      %19 = sbr.rel (0) target = $region5
    $region4: #{tpu_custom_call.1} parent=1 // pred_region
      %21 = vsyncadd [#allocation3], 0
      %s23 = sshll.u32 %s0, 4
      %s24 = int_to_ptr.hbm [resolvable:$true] %s23
      %s25 = sshll.u32 [#allocation2], 4
      %s26 = int_to_ptr.vmem [resolvable:$true] %s25
      %28 = dma.hbm_to_vmem [thread:$0]  %s24, 128, %s26, [#allocation3]
    $region5: #{tpu_custom_call.1} parent=1 // pred_fallthru
      _
    // Predicated region
    $region6: #{tpu_custom_call.1} parent=1 // pred_check
      _
    $region7: #{tpu_custom_call.1} parent=1 // pred_check_branch
      %30 = sbr.rel (0) target = $region9
    $region8: #{tpu_custom_call.1} parent=1 // pred_region
      %32 = vsyncadd [#allocation6], 0
      %s33 = sshll.u32 %s1, 4
      %s34 = int_to_ptr.hbm [resolvable:$true] %s33
      %s35 = sshll.u32 [#allocation5], 4
      %s36 = int_to_ptr.vmem [resolvable:$true] %s35
      %41 = dma.hbm_to_vmem [thread:$0]  %s34, 1024, %s36, [#allocation6], 64, 64, 4
    $region9: #{tpu_custom_call.1} parent=1 // pred_fallthru
      _
    // Predicated region
    $region10: #{tpu_custom_call.1} parent=1 // pred_check
      _
    $region11: #{tpu_custom_call.1} parent=1 // pred_check_branch
      %43 = sbr.rel (0) target = $region13
    $region12: #{tpu_custom_call.1} parent=1 // pred_region
      _
    $region13: #{tpu_custom_call.1} parent=1 // pred_fallthru
      _
    // Predicated region
    $region14: #{tpu_custom_call.1} parent=1 // pred_check
      _
    $region15: #{tpu_custom_call.1} parent=1 // pred_check_branch
      %45 = sbr.rel (0) target = $region17
    $region16: #{tpu_custom_call.1} parent=1 // pred_region
      %47 = vsyncadd [#allocation6], 0
      %s48 = sshll.u32 %s3, 4
      %s49 = int_to_ptr.hbm [resolvable:$true] %s48
      %s50 = sshll.u32 [#allocation7], 4
      %s51 = int_to_ptr.vmem [resolvable:$true] %s50
      %56 = dma.hbm_to_vmem [thread:$0]  %s49, 1024, %s51, [#allocation6], 64, 64, 4
    $region17: #{tpu_custom_call.1} parent=1 // pred_fallthru
      _
    // Predicated region
    $region18: #{tpu_custom_call.1} parent=1 // pred_check
      _
    $region19: #{tpu_custom_call.1} parent=1 // pred_check_branch
      %58 = sbr.rel (0) target = $region21
    $region20: #{tpu_custom_call.1} parent=1 // pred_region
      _
    $region21: #{tpu_custom_call.1} parent=1 // pred_fallthru
      _
    // Predicated region
    $region22: #{tpu_custom_call.1} parent=1 // pred_check
      _
    $region23: #{tpu_custom_call.1} parent=1 // pred_check_branch
      %60 = sbr.rel (0) target = $region25
    $region24: #{tpu_custom_call.1} parent=1 // pred_region
      %62 = vsyncadd [#allocation9], 0
      %s63 = sshll.u32 %s5, 4
      %s64 = int_to_ptr.hbm [resolvable:$true] %s63
      %s65 = sshll.u32 [#allocation8], 4
      %s66 = int_to_ptr.vmem [resolvable:$true] %s65
      %71 = dma.hbm_to_vmem [thread:$0]  %s64, 1024, %s66, [#allocation9], 64, 64, 4
    $region25: #{tpu_custom_call.1} parent=1 // pred_fallthru
      _
    // Predicated region
    $region26: #{tpu_custom_call.1} parent=1 // pred_check
      _
    $region27: #{tpu_custom_call.1} parent=1 // pred_check_branch
      %73 = sbr.rel (0) target = $region29
    $region28: #{tpu_custom_call.1} parent=1 // pred_region
      _
    $region29: #{tpu_custom_call.1} parent=1 // pred_fallthru
      _
    // Predicated region
    $region30: #{tpu_custom_call.1} parent=1 // pred_check
      _
    $region31: #{tpu_custom_call.1} parent=1 // pred_check_branch
      %75 = sbr.rel (0) target = $region33
    $region32: #{tpu_custom_call.1} parent=1 // pred_region
      %77 = vsyncadd [#allocation9], 0
      %s78 = sshll.u32 %s7, 4
      %s79 = int_to_ptr.hbm [resolvable:$true] %s78
      %s80 = sshll.u32 [#allocation10], 4
      %s81 = int_to_ptr.vmem [resolvable:$true] %s80
      %86 = dma.hbm_to_vmem [thread:$0]  %s79, 1024, %s81, [#allocation9], 64, 64, 4
    $region33: #{tpu_custom_call.1} parent=1 // pred_fallthru
      _
    // Predicated region
    $region34: #{tpu_custom_call.1} parent=1 // pred_check
      _
    $region35: #{tpu_custom_call.1} parent=1 // pred_check_branch
      %88 = sbr.rel (0) target = $region37
    $region36: #{tpu_custom_call.1} parent=1 // pred_region
      _
    $region37: #{tpu_custom_call.1} parent=1 // pred_fallthru
      _
    // Predicated region
    $region38: #{tpu_custom_call.1} parent=1 // pred_check
      _
    $region39: #{tpu_custom_call.1} parent=1 // pred_check_branch
      %90 = sbr.rel (0) target = $region41
    $region40: #{tpu_custom_call.1} parent=1 // pred_region
      %92 = dma.done [#allocation3], 128
    $region41: #{tpu_custom_call.1} parent=1 // pred_fallthru
      _
    // Predicated region
    $region42: #{tpu_custom_call.1} parent=1 // pred_check
      _
    $region43: #{tpu_custom_call.1} parent=1 // pred_check_branch
      %94 = sbr.rel (0) target = $region45
    $region44: #{tpu_custom_call.1} parent=1 // pred_region
      %96 = dma.done [#allocation6], 1024
    $region45: #{tpu_custom_call.1} parent=1 // pred_fallthru
      _
    // Predicated region
    $region46: #{tpu_custom_call.1} parent=1 // pred_check
      _
    $region47: #{tpu_custom_call.1} parent=1 // pred_check_branch
      %98 = sbr.rel (0) target = $region49
    $region48: #{tpu_custom_call.1} parent=1 // pred_region
      %100 = dma.done [#allocation6], 1024
    $region49: #{tpu_custom_call.1} parent=1 // pred_fallthru
      _
    // Predicated region
    $region50: #{tpu_custom_call.1} parent=1 // pred_check
      _
    $region51: #{tpu_custom_call.1} parent=1 // pred_check_branch
      %102 = sbr.rel (0) target = $region53
    $region52: #{tpu_custom_call.1} parent=1 // pred_region
      %104 = dma.done [#allocation9], 1024
    $region53: #{tpu_custom_call.1} parent=1 // pred_fallthru
      _
    // Predicated region
    $region54: #{tpu_custom_call.1} parent=1 // pred_check
      _
    $region55: #{tpu_custom_call.1} parent=1 // pred_check_branch
      %106 = sbr.rel (0) target = $region57
    $region56: #{tpu_custom_call.1} parent=1 // pred_region
      %108 = dma.done [#allocation9], 1024
    $region57: #{tpu_custom_call.1} parent=1 // pred_fallthru
      _
    %v109 = vld [vmem:[#allocation2] sm:$0xff]
    %v110 = vpack.c.bf16 %v109, %v109
    %v111 = vld [vmem:[#allocation5] sm:$0xf]
    %v112 = vld [vmem:[#allocation5 + $0x4] sm:$0xf]
    %v113 = vld [vmem:[#allocation5 + $0x8] sm:$0xf]
    %v114 = vld [vmem:[#allocation5 + $0xc] sm:$0xf]
    %v115 = vld [vmem:[#allocation5 + $0x10] sm:$0xf]
    %v116 = vld [vmem:[#allocation5 + $0x14] sm:$0xf]
    %v117 = vld [vmem:[#allocation5 + $0x18] sm:$0xf]
    %v118 = vld [vmem:[#allocation5 + $0x1c] sm:$0xf]
    %v119 = vld [vmem:[#allocation5 + $0x20] sm:$0xf]
    %v120 = vld [vmem:[#allocation5 + $0x24] sm:$0xf]
    %v121 = vld [vmem:[#allocation5 + $0x28] sm:$0xf]
    %v122 = vld [vmem:[#allocation5 + $0x2c] sm:$0xf]
    %v123 = vld [vmem:[#allocation5 + $0x30] sm:$0xf]
    %v124 = vld [vmem:[#allocation5 + $0x34] sm:$0xf]
    %v125 = vld [vmem:[#allocation5 + $0x38] sm:$0xf]
    %v126 = vld [vmem:[#allocation5 + $0x3c] sm:$0xf]
    %v127 = vld [vmem:[%s2] sm:$0x1]
    %v129 = vperm.slane %v127, 0
    %v147 = vunpack.c.l.b16 %v111
    %v148 = vunpack.c.l.b16 %v112
    %v149 = vunpack.c.l.b16 %v113
    %v150 = vunpack.c.l.b16 %v114
    %v151 = vunpack.c.l.b16 %v115
    %v152 = vunpack.c.l.b16 %v116
    %v153 = vunpack.c.l.b16 %v117
    %v154 = vunpack.c.l.b16 %v118
    %v155 = vunpack.c.l.b16 %v119
    %v156 = vunpack.c.l.b16 %v120
    %v157 = vunpack.c.l.b16 %v121
    %v158 = vunpack.c.l.b16 %v122
    %v159 = vunpack.c.l.b16 %v123
    %v160 = vunpack.c.l.b16 %v124
    %v161 = vunpack.c.l.b16 %v125
    %v162 = vunpack.c.l.b16 %v126
    %v163 = vpack.c.b16 %v148, %v147
    %v164 = vpack.c.b16 %v150, %v149
    %v165 = vpack.c.b16 %v152, %v151
    %v166 = vpack.c.b16 %v154, %v153
    %v167 = vpack.c.b16 %v156, %v155
    %v168 = vpack.c.b16 %v158, %v157
    %v169 = vpack.c.b16 %v160, %v159
    %v170 = vpack.c.b16 %v162, %v161
    %179 = vmatpush.bf16.msra.mxu0 %v170
    %180 = vmatpush.bf16.msra.mxu0 %v169
    %181 = vmatpush.bf16.msra.mxu0 %v168
    %182 = vmatpush.bf16.msra.mxu0 %v167
    %183 = vmatpush.bf16.msra.mxu0 %v166
    %184 = vmatpush.bf16.msra.mxu0 %v165
    %185 = vmatpush.bf16.msra.mxu0 %v164
    %186 = vmatpush.bf16.msra.mxu0 %v163
    %187 = vmatmul.bf16.gmra.mxu0 %v110
    %v188 = vpop.f32.mrf.mxu0
    %v189 = vadd.f32 %v129, %v188
    %v190 = vpop.f32.mrf.mxu0
    %191 = vdwg.mxu0
    %v192 = vmax.f32 %v189, 0.0
    %v193 = vpack.c.bf16 %v192, %v192
    %v194 = vld [vmem:[#allocation7] sm:$0xf]
    %v195 = vld [vmem:[#allocation7 + $0x4] sm:$0xf]
    %v196 = vld [vmem:[#allocation7 + $0x8] sm:$0xf]
    %v197 = vld [vmem:[#allocation7 + $0xc] sm:$0xf]
    %v198 = vld [vmem:[#allocation7 + $0x10] sm:$0xf]
    %v199 = vld [vmem:[#allocation7 + $0x14] sm:$0xf]
    %v200 = vld [vmem:[#allocation7 + $0x18] sm:$0xf]
    %v201 = vld [vmem:[#allocation7 + $0x1c] sm:$0xf]
    %v202 = vld [vmem:[#allocation7 + $0x20] sm:$0xf]
    %v203 = vld [vmem:[#allocation7 + $0x24] sm:$0xf]
    %v204 = vld [vmem:[#allocation7 + $0x28] sm:$0xf]
    %v205 = vld [vmem:[#allocation7 + $0x2c] sm:$0xf]
    %v206 = vld [vmem:[#allocation7 + $0x30] sm:$0xf]
    %v207 = vld [vmem:[#allocation7 + $0x34] sm:$0xf]
    %v208 = vld [vmem:[#allocation7 + $0x38] sm:$0xf]
    %v209 = vld [vmem:[#allocation7 + $0x3c] sm:$0xf]
    %v210 = vld [vmem:[%s4] sm:$0x1]
    %v212 = vperm.slane %v210, 0
    %v230 = vunpack.c.l.b16 %v194
    %v231 = vunpack.c.l.b16 %v195
    %v232 = vunpack.c.l.b16 %v196
    %v233 = vunpack.c.l.b16 %v197
    %v234 = vunpack.c.l.b16 %v198
    %v235 = vunpack.c.l.b16 %v199
    %v236 = vunpack.c.l.b16 %v200
    %v237 = vunpack.c.l.b16 %v201
    %v238 = vunpack.c.l.b16 %v202
    %v239 = vunpack.c.l.b16 %v203
    %v240 = vunpack.c.l.b16 %v204
    %v241 = vunpack.c.l.b16 %v205
    %v242 = vunpack.c.l.b16 %v206
    %v243 = vunpack.c.l.b16 %v207
    %v244 = vunpack.c.l.b16 %v208
    %v245 = vunpack.c.l.b16 %v209
    %v246 = vpack.c.b16 %v231, %v230
    %v247 = vpack.c.b16 %v233, %v232
    %v248 = vpack.c.b16 %v235, %v234
    %v249 = vpack.c.b16 %v237, %v236
    %v250 = vpack.c.b16 %v239, %v238
    %v251 = vpack.c.b16 %v241, %v240
    %v252 = vpack.c.b16 %v243, %v242
    %v253 = vpack.c.b16 %v245, %v244
    %262 = vmatpush.bf16.msra.mxu0 %v253
    %263 = vmatpush.bf16.msra.mxu0 %v252
    %264 = vmatpush.bf16.msra.mxu0 %v251
    %265 = vmatpush.bf16.msra.mxu0 %v250
    %266 = vmatpush.bf16.msra.mxu0 %v249
    %267 = vmatpush.bf16.msra.mxu0 %v248
    %268 = vmatpush.bf16.msra.mxu0 %v247
    %269 = vmatpush.bf16.msra.mxu0 %v246
    %270 = vmatmul.bf16.gmra.mxu0 %v193
    %v271 = vpop.f32.mrf.mxu0
    %v272 = vadd.f32 %v212, %v271
    %v273 = vpop.f32.mrf.mxu0
    %274 = vdwg.mxu0
    %v275 = vpack.c.bf16 %v272, %v272
    %v276 = vld [vmem:[#allocation8] sm:$0xf]
    %v277 = vld [vmem:[#allocation8 + $0x4] sm:$0xf]
    %v278 = vld [vmem:[#allocation8 + $0x8] sm:$0xf]
    %v279 = vld [vmem:[#allocation8 + $0xc] sm:$0xf]
    %v280 = vld [vmem:[#allocation8 + $0x10] sm:$0xf]
    %v281 = vld [vmem:[#allocation8 + $0x14] sm:$0xf]
    %v282 = vld [vmem:[#allocation8 + $0x18] sm:$0xf]
    %v283 = vld [vmem:[#allocation8 + $0x1c] sm:$0xf]
    %v284 = vld [vmem:[#allocation8 + $0x20] sm:$0xf]
    %v285 = vld [vmem:[#allocation8 + $0x24] sm:$0xf]
    %v286 = vld [vmem:[#allocation8 + $0x28] sm:$0xf]
    %v287 = vld [vmem:[#allocation8 + $0x2c] sm:$0xf]
    %v288 = vld [vmem:[#allocation8 + $0x30] sm:$0xf]
    %v289 = vld [vmem:[#allocation8 + $0x34] sm:$0xf]
    %v290 = vld [vmem:[#allocation8 + $0x38] sm:$0xf]
    %v291 = vld [vmem:[#allocation8 + $0x3c] sm:$0xf]
    %v292 = vld [vmem:[%s6] sm:$0x1]
    %v294 = vperm.slane %v292, 0
    %v312 = vunpack.c.l.b16 %v276
    %v313 = vunpack.c.l.b16 %v277
    %v314 = vunpack.c.l.b16 %v278
    %v315 = vunpack.c.l.b16 %v279
    %v316 = vunpack.c.l.b16 %v280
    %v317 = vunpack.c.l.b16 %v281
    %v318 = vunpack.c.l.b16 %v282
    %v319 = vunpack.c.l.b16 %v283
    %v320 = vunpack.c.l.b16 %v284
    %v321 = vunpack.c.l.b16 %v285
    %v322 = vunpack.c.l.b16 %v286
    %v323 = vunpack.c.l.b16 %v287
    %v324 = vunpack.c.l.b16 %v288
    %v325 = vunpack.c.l.b16 %v289
    %v326 = vunpack.c.l.b16 %v290
    %v327 = vunpack.c.l.b16 %v291
    %v328 = vpack.c.b16 %v313, %v312
    %v329 = vpack.c.b16 %v315, %v314
    %v330 = vpack.c.b16 %v317, %v316
    %v331 = vpack.c.b16 %v319, %v318
    %v332 = vpack.c.b16 %v321, %v320
    %v333 = vpack.c.b16 %v323, %v322
    %v334 = vpack.c.b16 %v325, %v324
    %v335 = vpack.c.b16 %v327, %v326
    %344 = vmatpush.bf16.msra.mxu0 %v335
    %345 = vmatpush.bf16.msra.mxu0 %v334
    %346 = vmatpush.bf16.msra.mxu0 %v333
    %347 = vmatpush.bf16.msra.mxu0 %v332
    %348 = vmatpush.bf16.msra.mxu0 %v331
    %349 = vmatpush.bf16.msra.mxu0 %v330
    %350 = vmatpush.bf16.msra.mxu0 %v329
    %351 = vmatpush.bf16.msra.mxu0 %v328
    %352 = vmatmul.bf16.gmra.mxu0 %v275
    %v353 = vpop.f32.mrf.mxu0
    %v354 = vadd.f32 %v294, %v353
    %v355 = vpop.f32.mrf.mxu0
    %356 = vdwg.mxu0
    %v357 = vmax.f32 %v354, 0.0
    %v358 = vpack.c.bf16 %v357, %v357
    %v359 = vld [vmem:[#allocation10] sm:$0xf]
    %v360 = vld [vmem:[#allocation10 + $0x4] sm:$0xf]
    %v361 = vld [vmem:[#allocation10 + $0x8] sm:$0xf]
    %v362 = vld [vmem:[#allocation10 + $0xc] sm:$0xf]
    %v363 = vld [vmem:[#allocation10 + $0x10] sm:$0xf]
    %v364 = vld [vmem:[#allocation10 + $0x14] sm:$0xf]
    %v365 = vld [vmem:[#allocation10 + $0x18] sm:$0xf]
    %v366 = vld [vmem:[#allocation10 + $0x1c] sm:$0xf]
    %v367 = vld [vmem:[#allocation10 + $0x20] sm:$0xf]
    %v368 = vld [vmem:[#allocation10 + $0x24] sm:$0xf]
    %v369 = vld [vmem:[#allocation10 + $0x28] sm:$0xf]
    %v370 = vld [vmem:[#allocation10 + $0x2c] sm:$0xf]
    %v371 = vld [vmem:[#allocation10 + $0x30] sm:$0xf]
    %v372 = vld [vmem:[#allocation10 + $0x34] sm:$0xf]
    %v373 = vld [vmem:[#allocation10 + $0x38] sm:$0xf]
    %v374 = vld [vmem:[#allocation10 + $0x3c] sm:$0xf]
    %v375 = vld [vmem:[%s8] sm:$0x1]
    %v377 = vperm.slane %v375, 0
    %v395 = vunpack.c.l.b16 %v359
    %v396 = vunpack.c.l.b16 %v360
    %v397 = vunpack.c.l.b16 %v361
    %v398 = vunpack.c.l.b16 %v362
    %v399 = vunpack.c.l.b16 %v363
    %v400 = vunpack.c.l.b16 %v364
    %v401 = vunpack.c.l.b16 %v365
    %v402 = vunpack.c.l.b16 %v366
    %v403 = vunpack.c.l.b16 %v367
    %v404 = vunpack.c.l.b16 %v368
    %v405 = vunpack.c.l.b16 %v369
    %v406 = vunpack.c.l.b16 %v370
    %v407 = vunpack.c.l.b16 %v371
    %v408 = vunpack.c.l.b16 %v372
    %v409 = vunpack.c.l.b16 %v373
    %v410 = vunpack.c.l.b16 %v374
    %v411 = vpack.c.b16 %v396, %v395
    %v412 = vpack.c.b16 %v398, %v397
    %v413 = vpack.c.b16 %v400, %v399
    %v414 = vpack.c.b16 %v402, %v401
    %v415 = vpack.c.b16 %v404, %v403
    %v416 = vpack.c.b16 %v406, %v405
    %v417 = vpack.c.b16 %v408, %v407
    %v418 = vpack.c.b16 %v410, %v409
    %427 = vmatpush.bf16.msra.mxu0 %v418
    %428 = vmatpush.bf16.msra.mxu0 %v417
    %429 = vmatpush.bf16.msra.mxu0 %v416
    %430 = vmatpush.bf16.msra.mxu0 %v415
    %431 = vmatpush.bf16.msra.mxu0 %v414
    %432 = vmatpush.bf16.msra.mxu0 %v413
    %433 = vmatpush.bf16.msra.mxu0 %v412
    %434 = vmatpush.bf16.msra.mxu0 %v411
    %435 = vmatmul.bf16.gmra.mxu0 %v358
    %v436 = vpop.f32.mrf.mxu0
    %v437 = vadd.f32 %v377, %v436
    %v438 = vpop.f32.mrf.mxu0
    %439 = vdwg.mxu0
    %v440 = vxor.u32 %v437, 2147483648
    %v441 = vmul.f32 %v440, 1.442695
    %v442 = vpow.pop %v441
    %v443 = vadd.f32 %v442, 1.0
    %v444 = vrcp.pop %v443
    %v445 = vmul.f32 %v443, %v444
    %v446 = vsub.f32 1.0, %v445
    %v447 = vmul.f32 %v444, %v446
    %v448 = vadd.f32 %v444, %v447
    %vm449 = vweird.f32 %v443
    %vm450 = vweird.f32 %v444
    %vm451 = vmor %vm449, %vm450
    %v452 = vsel %vm451, %v444, %v448
    %v453 = vand.u32 2147483647, %v443
    %vm454 = vcmp.eq.f32.partialorder %v453, 8.507059e+37
    %v455 = vand.u32 %v443, 2147483648
    %v456 = vor.u32 1.1754944e-38, %v455
    %v457 = vsel %vm454, %v456, %v452
    %v458 = vmul.f32 1.0, %v457
    %v459 = vmul.f32 %v272, %v458
    %v460 = vadd.f32 %v459, %v109
    %v461 = vmax.f32 %v460, 0.0
    %462 = vst [vmem:[#allocation11] sm:$0xff] %v461
    // Predicated region
    $region58: #{tpu_custom_call.1} parent=1 // pred_check
      _
    $region59: #{tpu_custom_call.1} parent=1 // pred_check_branch
      %464 = sbr.rel (0) target = $region61
    $region60: #{tpu_custom_call.1} parent=1 // pred_region
      %466 = vsyncadd [#allocation4], 0
      %s468 = sshll.u32 [#allocation11], 4
      %s469 = int_to_ptr.vmem [resolvable:$true] %s468
      %s470 = sshll.u32 %s9, 4
      %s471 = int_to_ptr.hbm [resolvable:$true] %s470
      %473 = dma.vmem_to_hbm [thread:$0]  %s469, 128, %s471, [#allocation4]
    $region61: #{tpu_custom_call.1} parent=1 // pred_fallthru
      _
    // Predicated region
    $region62: #{tpu_custom_call.1} parent=1 // pred_check
      _
    $region63: #{tpu_custom_call.1} parent=1 // pred_check_branch
      %475 = sbr.rel (0) target = $region65
    $region64: #{tpu_custom_call.1} parent=1 // pred_region
      %477 = dma.done [#allocation4], 128
    $region65: #{tpu_custom_call.1} parent=1 // pred_fallthru
      _
    %478 = vsyncpa [#allocation3], 1
    %479 = vsyncpa [#allocation6], 1
    %480 = vsyncpa [#allocation9], 1
    %481 = vsyncpa [#allocation4], 1

</llo_original>
